<compile_context>
chip_gen: v6e
topology: v6e:2x2x1
jax: 0.10.0
libtpu: 0.0.40
codegen_flags: <defaults>
</compile_context>

<pallas_src>
import functools

import jax
import jax.numpy as jnp
from jax.experimental import pallas as pl
from jax.experimental.pallas import tpu as pltpu

BN_EPS = 1e-5
LANES = 128


def _round_up(n, m):
    return ((n + m - 1) // m) * m


def _residual_kernel(x_ref, wt_ref, gb_ref, out_ref, *, n_o, tn):
    """One 128-wide column tile of the fused output [relu(bn(fc(x))), x].

    x_ref:   (B, IP)  f32  zero-padded input, resident across all grid steps
    wt_ref:  (IP, TN) bf16 pre-transposed + zero-padded fc weight tile
    gb_ref:  (2, OP)  f32  row 0 = gamma, row 1 = beta (resident)
    out_ref: (B, TN)  f32  column block j of the (B, OP + IP) fused output
    """
    j = pl.program_id(0)

    @pl.when(j < n_o)
    def _compute():
        # Linear on the MXU: bf16 operands, f32 accumulation.  The fc bias is
        # omitted on purpose: a per-feature bias cancels exactly under
        # training-mode BatchNorm.
        y = jnp.dot(x_ref[...].astype(jnp.bfloat16), wt_ref[...],
                    preferred_element_type=jnp.float32)            # (B, TN)

        # BatchNorm1d, training mode: per-feature batch mean / biased variance.
        mean = jnp.mean(y, axis=0, keepdims=True)
        centered = y - mean
        var = jnp.mean(centered * centered, axis=0, keepdims=True)

        # Per-tile gamma/beta sliced from the single resident (2, OP) block.
        col = pl.multiple_of(j * tn, tn)
        gb = gb_ref[:, pl.ds(col, tn)]                             # (2, TN)
        scale = jax.lax.rsqrt(var + BN_EPS) * gb[0:1, :]           # fold gamma
        bn = centered * scale + gb[1:2, :]

        # ReLU, lane-dense 128-wide store.
        out_ref[...] = jnp.maximum(bn, 0.0).astype(out_ref.dtype)

    @pl.when(j >= n_o)
    def _passthrough():
        # Fused concat: copy a 128-wide column slab of the resident x block
        # into the right-hand half of the output.
        col = pl.multiple_of((j - n_o) * tn, tn)
        out_ref[...] = x_ref[:, pl.ds(col, tn)].astype(out_ref.dtype)


def init_residual_params(key, i, o):
    """PyTorch-default init (Linear: U(-1/sqrt(i), 1/sqrt(i)); BN: gamma=1,
    beta=0) plus the kernel-ready padded/transposed/bf16 parameters."""
    kw, kb = jax.random.split(key)
    bound = 1.0 / (i ** 0.5)
    w = jax.random.uniform(kw, (o, i), jnp.float32, minval=-bound, maxval=bound)
    b = jax.random.uniform(kb, (o,), jnp.float32, minval=-bound, maxval=bound)
    gamma = jnp.ones((o,), jnp.float32)
    beta = jnp.zeros((o,), jnp.float32)

    ip, op = _round_up(i, LANES), _round_up(o, LANES)
    # Pre-transposed (in, out), zero-padded, bf16 -- done once at init time.
    wt_pad = jnp.zeros((ip, op), jnp.bfloat16).at[:i, :o].set(
        w.T.astype(jnp.bfloat16))
    # gamma/beta packed into one array; padded columns get gamma=0, beta=0 so
    # the padded activation columns are exactly 0.
    gb_pad = jnp.zeros((2, op), jnp.float32).at[0, :o].set(gamma).at[1, :o].set(beta)

    return dict(w=w, b=b, gamma=gamma, beta=beta, wt_pad=wt_pad, gb_pad=gb_pad)


@functools.partial(jax.jit, static_argnames=("i", "o", "tn"))
def residual_forward(x, wt_pad, gb_pad, *, i, o, tn=LANES):
    """Forward pass of the CTGAN Residual layer.

    x:      (B, I)   f32
    wt_pad: (IP, OP) bf16  pre-transposed, zero-padded fc weight
    gb_pad: (2, OP)  f32   packed BN gamma (row 0) / beta (row 1), zero-padded
    returns (B, O + I) = [relu(bn(fc(x))), x]
    """
    b = x.shape[0]
    ip, op = wt_pad.shape
    assert ip % tn == 0 and op % tn == 0
    n_o, n_i = op // tn, ip // tn
    grid = (n_o + n_i,)

    # Zero-pad the input features only when I is not already 128-aligned.
    x_pad = x if ip == i else jnp.pad(x, ((0, 0), (0, ip - i)))

    kernel = functools.partial(_residual_kernel, n_o=n_o, tn=tn)

    fused = pl.pallas_call(
        kernel,
        out_shape=jax.ShapeDtypeStruct((b, op + ip), jnp.float32),
        grid=grid,
        in_specs=[
            # x: constant index map -> fetched once, resident across steps.
            pl.BlockSpec((b, ip), lambda j: (0, 0)),
            # Weight tile; clamped during passthrough steps so no new DMA is
            # issued once the compute tiles are done.
            pl.BlockSpec((ip, tn), lambda j: (0, jnp.minimum(j, n_o - 1))),
            # Packed gamma/beta: single resident block.
            pl.BlockSpec((2, op), lambda j: (0, 0)),
        ],
        out_specs=pl.BlockSpec((b, tn), lambda j: (0, j)),
        compiler_params=pltpu.CompilerParams(
            # Every column tile (compute or passthrough) is independent ->
            # shard across TensorCores on megacore parts (v7x).
            dimension_semantics=("parallel",),
        ),
        cost_estimate=pl.CostEstimate(
            flops=2 * b * ip * op,
            transcendentals=0,
            bytes_accessed=4 * b * ip + 2 * ip * op + 4 * 2 * op
            + 4 * b * (op + ip),
        ),
    )(x_pad, wt_pad, gb_pad)

    if op == o and ip == i:
        return fused  # already exactly [act, x]
    # Non-128-aligned dims: strip the zero padding (pure layout).
    return jnp.concatenate([fused[:, :o], fused[:, op:op + i]], axis=1)


def reference_forward(x, w, b, gamma, beta, matmul_dtype=jnp.float32):
    """Pure-JAX reference mirroring the PyTorch module (training-mode BN,
    including the fc bias, which cancels under BN)."""
    y = jnp.dot(x.astype(matmul_dtype), w.T.astype(matmul_dtype),
                preferred_element_type=jnp.float32) + b
    mean = jnp.mean(y, axis=0, keepdims=True)
    var = jnp.mean((y - mean) ** 2, axis=0, keepdims=True)
    bn = (y - mean) * jax.lax.rsqrt(var + BN_EPS) * gamma + beta
    act = jnp.maximum(bn, 0.0)
    return jnp.concatenate([act, x], axis=1)


if __name__ == "__main__":
    # Small shapes consistent with Residual(i, o): batch=8, i=32, o=32.
    B, I, O = 8, 32, 32

    key = jax.random.PRNGKey(0)
    kx, kp = jax.random.split(key)

    x = jax.random.normal(kx, (B, I), dtype=jnp.float32)
    params = init_residual_params(kp, I, O)

    out = residual_forward(x, params["wt_pad"], params["gb_pad"], i=I, o=O)
    out = jax.block_until_ready(out)
    assert out.shape == (B, O + I), out.shape

    # Matched-precision reference (same bf16 matmul recipe, f32 BN): tight check
    # of the kernel itself.
    ref_bf16 = reference_forward(x, params["w"], params["b"], params["gamma"],
                                 params["beta"], matmul_dtype=jnp.bfloat16)
    err_bf16 = float(jnp.max(jnp.abs(out - ref_bf16)))
    assert jnp.allclose(out, ref_bf16, atol=2e-3, rtol=2e-3), err_bf16

    # Full-f32 reference mirroring the PyTorch module: loose check covering the
    # intentional bf16 weight/activation cast (BN renormalizes, so the drift is
    # small but non-zero).
    ref_f32 = reference_forward(x, params["w"], params["b"], params["gamma"],
                                params["beta"], matmul_dtype=jnp.float32)
    err_f32 = float(jnp.max(jnp.abs(out - ref_f32)))
    assert jnp.allclose(out, ref_f32, atol=1e-1, rtol=1e-1), err_f32

    # TODO(synk): BatchNorm1d running_mean / running_var buffer updates (a
    # training-time side effect) are not emulated; forward output is unaffected.

    print("KERNEL_OK")
</pallas_src>

<mosaic_0001>
module attributes {stable_mosaic.version = 11 : i64} {
  func.func @_residual_kernel(%arg0: i32, %arg1: memref<8x128xf32, #tpu.memory_space<vmem>>, %arg2: memref<128x128xbf16, #tpu.memory_space<vmem>>, %arg3: memref<2x128xf32, #tpu.memory_space<vmem>>, %arg4: memref<8x128xf32, #tpu.memory_space<vmem>>) attributes {dimension_semantics = [#tpu.dimension_semantics<parallel>], iteration_bounds = array<i64: 2>, scalar_prefetch = 0 : i64, scratch_operands = 0 : i64, tpu.core_type = #tpu.core_type<tc>, window_params = [{pipeline_mode = #tpu.pipeline_mode<synchronous>, transform_indices = @transform_0, window_bounds = array<i64: 8, 128>}, {transform_indices = @transform_1, window_bounds = array<i64: 128, 128>}, {pipeline_mode = #tpu.pipeline_mode<synchronous>, transform_indices = @transform_2, window_bounds = array<i64: 2, 128>}, {transform_indices = @transform_3, window_bounds = array<i64: 8, 128>}]} {
    %c1_i32 = arith.constant 1 : i32
    %0 = arith.cmpi slt, %arg0, %c1_i32 : i32
    %1 = arith.extui %0 : i1 to i32
    %c0_i32 = arith.constant 0 : i32
    %2 = arith.cmpi ne, %1, %c0_i32 : i32
    scf.if %2 {
      %c0 = arith.constant 0 : index
      %c0_2 = arith.constant 0 : index
      %6 = vector.load %arg1[%c0, %c0_2] : memref<8x128xf32, #tpu.memory_space<vmem>>, vector<8x128xf32>
      %7 = arith.truncf %6 : vector<8x128xf32> to vector<8x128xbf16>
      %c0_3 = arith.constant 0 : index
      %c0_4 = arith.constant 0 : index
      %8 = vector.load %arg2[%c0_3, %c0_4] : memref<128x128xbf16, #tpu.memory_space<vmem>>, vector<128x128xbf16>
      %cst = arith.constant dense<0.000000e+00> : vector<8x128xf32>
      %9 = tpu.matmul %7, %8, %cst {dimension_numbers = #tpu.dot_dimension_numbers<[1], [0], [0], [1], [0, 0, 1, 1], [], []>} : vector<8x128xbf16>, vector<128x128xbf16>, vector<8x128xf32> -> vector<8x128xf32>
      %cst_5 = arith.constant dense<0.000000e+00> : vector<128xf32>
      %10 = vector.multi_reduction <add>, %9, %cst_5 [0] : vector<8x128xf32> to vector<128xf32>
      %11 = vector.shape_cast %10 : vector<128xf32> to vector<1x128xf32>
      %cst_6 = arith.constant 8.000000e+00 : f32
      %12 = vector.broadcast %cst_6 : f32 to vector<1x128xf32>
      %13 = arith.divf %11, %12 : vector<1x128xf32>
      %14 = vector.broadcast %13 : vector<1x128xf32> to vector<8x128xf32>
      %15 = arith.subf %9, %14 : vector<8x128xf32>
      %16 = arith.mulf %15, %15 : vector<8x128xf32>
      %cst_7 = arith.constant dense<0.000000e+00> : vector<128xf32>
      %17 = vector.multi_reduction <add>, %16, %cst_7 [0] : vector<8x128xf32> to vector<128xf32>
      %18 = vector.shape_cast %17 : vector<128xf32> to vector<1x128xf32>
      %cst_8 = arith.constant 8.000000e+00 : f32
      %19 = vector.broadcast %cst_8 : f32 to vector<1x128xf32>
      %20 = arith.divf %18, %19 : vector<1x128xf32>
      %c128_i32 = arith.constant 128 : i32
      %21 = arith.muli %arg0, %c128_i32 : i32
      %22 = tpu.assume_multiple %21, 128 : i32
      %c0_9 = arith.constant 0 : index
      %23 = arith.index_cast %22 : i32 to index
      %24 = vector.load %arg3[%c0_9, %23] : memref<2x128xf32, #tpu.memory_space<vmem>>, vector<2x128xf32>
      %cst_10 = arith.constant 9.99999974E-6 : f32
      %25 = vector.broadcast %cst_10 : f32 to vector<1x128xf32>
      %26 = arith.addf %20, %25 : vector<1x128xf32>
      %27 = math.rsqrt %26 : vector<1x128xf32>
      %28 = vector.extract_strided_slice %24 {offsets = [0, 0], sizes = [1, 128], strides = [1, 1]} : vector<2x128xf32> to vector<1x128xf32>
      %29 = arith.mulf %27, %28 : vector<1x128xf32>
      %30 = vector.broadcast %29 : vector<1x128xf32> to vector<8x128xf32>
      %31 = arith.mulf %15, %30 : vector<8x128xf32>
      %32 = vector.extract_strided_slice %24 {offsets = [1, 0], sizes = [1, 128], strides = [1, 1]} : vector<2x128xf32> to vector<1x128xf32>
      %33 = vector.broadcast %32 : vector<1x128xf32> to vector<8x128xf32>
      %34 = arith.addf %31, %33 : vector<8x128xf32>
      %cst_11 = arith.constant 0.000000e+00 : f32
      %35 = vector.broadcast %cst_11 : f32 to vector<8x128xf32>
      %36 = arith.maximumf %34, %35 : vector<8x128xf32>
      %c0_12 = arith.constant 0 : index
      %c0_13 = arith.constant 0 : index
      %37 = vector.load %arg4[%c0_12, %c0_13] : memref<8x128xf32, #tpu.memory_space<vmem>>, vector<8x128xf32>
      tpu.vector_store %arg4[%c0_12, %c0_13], %36 {strides = array<i32>} : memref<8x128xf32, #tpu.memory_space<vmem>>, vector<8x128xf32>,
    } else {
    }
    %c1_i32_0 = arith.constant 1 : i32
    %3 = arith.cmpi sge, %arg0, %c1_i32_0 : i32
    %4 = arith.extui %3 : i1 to i32
    %c0_i32_1 = arith.constant 0 : i32
    %5 = arith.cmpi ne, %4, %c0_i32_1 : i32
    scf.if %5 {
      %c1_i32_2 = arith.constant 1 : i32
      %6 = arith.subi %arg0, %c1_i32_2 : i32
      %c128_i32 = arith.constant 128 : i32
      %7 = arith.muli %6, %c128_i32 : i32
      %8 = tpu.assume_multiple %7, 128 : i32
      %c0 = arith.constant 0 : index
      %9 = arith.index_cast %8 : i32 to index
      %10 = vector.load %arg1[%c0, %9] : memref<8x128xf32, #tpu.memory_space<vmem>>, vector<8x128xf32>
      %c0_3 = arith.constant 0 : index
      %c0_4 = arith.constant 0 : index
      %11 = vector.load %arg4[%c0_3, %c0_4] : memref<8x128xf32, #tpu.memory_space<vmem>>, vector<8x128xf32>
      tpu.vector_store %arg4[%c0_3, %c0_4], %10 {strides = array<i32>} : memref<8x128xf32, #tpu.memory_space<vmem>>, vector<8x128xf32>,
    } else {
    }
    return
  }
  func.func @transform_0(%arg0: i32) -> (i32, i32) {
    %c0_i32 = arith.constant 0 : i32
    %c0_i32_0 = arith.constant 0 : i32
    %c0_i32_1 = arith.constant 0 : i32
    return %c0_i32, %c0_i32_0 : i32, i32
  }
  func.func @transform_1(%arg0: i32) -> (i32, i32) {
    %c0_i32 = arith.constant 0 : i32
    %0 = arith.minsi %arg0, %c0_i32 : i32
    %c0_i32_0 = arith.constant 0 : i32
    %c0_i32_1 = arith.constant 0 : i32
    return %c0_i32_0, %0 : i32, i32
  }
  func.func @transform_2(%arg0: i32) -> (i32, i32) {
    %c0_i32 = arith.constant 0 : i32
    %c0_i32_0 = arith.constant 0 : i32
    %c0_i32_1 = arith.constant 0 : i32
    return %c0_i32, %c0_i32_0 : i32, i32
  }
  func.func @transform_3(%arg0: i32) -> (i32, i32) {
    %c0_i32 = arith.constant 0 : i32
    %c0_i32_0 = arith.constant 0 : i32
    return %c0_i32, %arg0 : i32, i32
  }
}

</mosaic_0001>

<llo_original>
// kernel: residual_forward.1
$region0: #{residual_forward.1}
  #allocation0 [shape = 'u32[]', space=smem, size = 0x4, offset = 0x4, fixed_abs, tag = 'smem constant byte address 0x4 - core index']
  #allocation1 [shape = 'u32[144,128]{1,0:T(1,128)}', space=vmem, size = 0x12000, scoped, tag = 'internal scratch']
  %s0 = inlined_call_operand.vmem [shape: f32[8,128], index: 0, kind: input, shape index: {}]
  %s1 = inlined_call_operand.hbm [shape: bf16[128,128], index: 1, kind: input, shape index: {}]
  %s2 = inlined_call_operand.vmem [shape: f32[2,128], index: 2, kind: input, shape index: {}]
  %s3 = inlined_call_operand.vmem [shape: f32[8,256], index: 3, kind: output, shape index: {}]
  %s4 = sld [smem:[#allocation0]]
  $region57: #{residual_forward.1} parent=0
    _
  %s6 = ssub.s32 1, %s4
  %s7 = scalar_select 0, %s6, %s4
  $region1: #{residual_forward.1} parent=0
    #allocation2 [shape = 'u8[65536]{0}', space=vmem, size = 0x10000, scoped, tag = 'input window, operand 1']
    #allocation3 [shape = 's32[2]{0}', space=sflag, size = 0x8, scoped, tag = 'scoped memory for residual_forward.1']
    %8 = vsyncpa [#allocation3], 0
    %s9 = scalar_lea.sflag [#allocation3], 1
    %10 = vsyncpa %s9, 0
    loop: start=0, step=1, limit=4
    $region2: #{residual_forward.1} parent=1 // loop_pre_header
      _
    $region3: #{residual_forward.1} parent=1 // loop_header
      %s12 = sphi 0, %s16
      %p13 = scmp.ge.s32.totalorder %s12, 4
      %s20 = sphi 0, %s20
      %s22 = sphi 0, %s20
      %s23 = sphi 0, %s22
      %s37 = sphi 0, %s23
      %s47 = sphi 0, %s49
      %s50 = sphi 0, %s47
      %s51 = sphi 0, %s50
      %s67 = sphi 0, %s51
      %s71 = sphi 0, %s71
      %s73 = sphi 0, %s71
      %s74 = sphi 0, %s73
      %s88 = sphi 0, %s74
      %s94 = sphi 0, %s96
      %s97 = sphi 0, %s94
      %s98 = sphi 0, %s97
      %s114 = sphi 0, %s98
    $region4: #{residual_forward.1} parent=1 // loop_header_branch
      %15 = sbr.rel (%p13) target = $region8
    $region5: #{residual_forward.1} parent=1 // loop_body
      %s17 = ssub.s32 %s12, 1
      %s18 = ssub.s32 %s12, 2
      %s19 = sadd.s32 %s12, 1
      %s21 = sadd.s32 %s20, 1
      %p24 = scmp.eq.s32.totalorder %s12, 1
      %p25 = scmp.ne.s32.totalorder %s20, %s22
      %p26 = scmp.eq.s32.totalorder %s12, 0
      %p27 = por %p25, %p26
      %p28 = scmp.ne.s32.totalorder %s20, %s22
      %p29 = scmp.eq.s32.totalorder %s17, 1
      %p30 = por %p28, %p29
      %p31 = scmp.ne.s32.totalorder %s22, %s23
      %p32 = scmp.eq.s32.totalorder %s17, 0
      %p33 = por %p31, %p32
      %p34 = scmp.ne.s32.totalorder %s22, %s23
      %p35 = scmp.eq.s32.totalorder %s18, 1
      %p36 = por %p34, %p35
      %p38 = scmp.ne.s32.totalorder %s23, %s37
      %p39 = scmp.eq.s32.totalorder %s18, 0
      %p40 = por %p38, %p39
      %p41 = scmp.lt.s32.totalorder %s12, 0
      %s42 = scalar_select %p41, %s12, 0
      %p43 = scmp.lt.s32.totalorder %s19, 0
      %s44 = scalar_select %p43, %s19, 0
      %s45 = ssub.s32 %s42, %s44
      %p46 = scmp.eq.s32.totalorder %s45, 0
      %s48 = sadd.s32 %s47, 1
      %s49 = scalar_select %p46, %s47, %s48
      %p52 = pneg %p46
      %p53 = scmp.eq.s32.totalorder %s12, 1
      %p54 = por %p52, %p53
      %p55 = scmp.ne.s32.totalorder %s47, %s50
      %p56 = scmp.eq.s32.totalorder %s12, 0
      %p57 = por %p55, %p56
      %p58 = scmp.ne.s32.totalorder %s47, %s50
      %p59 = scmp.eq.s32.totalorder %s17, 1
      %p60 = por %p58, %p59
      %p61 = scmp.ne.s32.totalorder %s50, %s51
      %p62 = scmp.eq.s32.totalorder %s17, 0
      %p63 = por %p61, %p62
      %p64 = scmp.ne.s32.totalorder %s50, %s51
      %p65 = scmp.eq.s32.totalorder %s18, 1
      %p66 = por %p64, %p65
      %p68 = scmp.ne.s32.totalorder %s51, %s67
      %p69 = scmp.eq.s32.totalorder %s18, 0
      %p70 = por %p68, %p69
      %s72 = sadd.s32 %s71, 1
      %p75 = scmp.eq.s32.totalorder %s12, 1
      %p76 = scmp.ne.s32.totalorder %s71, %s73
      %p77 = scmp.eq.s32.totalorder %s12, 0
      %p78 = por %p76, %p77
      %p79 = scmp.ne.s32.totalorder %s71, %s73
      %p80 = scmp.eq.s32.totalorder %s17, 1
      %p81 = por %p79, %p80
      %p82 = scmp.ne.s32.totalorder %s73, %s74
      %p83 = scmp.eq.s32.totalorder %s17, 0
      %p84 = por %p82, %p83
      %p85 = scmp.ne.s32.totalorder %s73, %s74
      %p86 = scmp.eq.s32.totalorder %s18, 1
      %p87 = por %p85, %p86
      %p89 = scmp.ne.s32.totalorder %s74, %s88
      %p90 = scmp.eq.s32.totalorder %s18, 0
      %p91 = por %p89, %p90
      %s92 = ssub.s32 %s12, %s19
      %p93 = scmp.eq.s32.totalorder %s92, 0
      %s95 = sadd.s32 %s94, 1
      %s96 = scalar_select %p93, %s94, %s95
      %p99 = pneg %p93
      %p100 = scmp.eq.s32.totalorder %s12, 1
      %p101 = por %p99, %p100
      %p102 = scmp.ne.s32.totalorder %s94, %s97
      %p103 = scmp.eq.s32.totalorder %s12, 0
      %p104 = por %p102, %p103
      %p105 = scmp.ne.s32.totalorder %s94, %s97
      %p106 = scmp.eq.s32.totalorder %s17, 1
      %p107 = por %p105, %p106
      %p108 = scmp.ne.s32.totalorder %s97, %s98
      %p109 = scmp.eq.s32.totalorder %s17, 0
      %p110 = por %p108, %p109
      %p111 = scmp.ne.s32.totalorder %s97, %s98
      %p112 = scmp.eq.s32.totalorder %s18, 1
      %p113 = por %p111, %p112
      %p115 = scmp.ne.s32.totalorder %s98, %s114
      %p116 = scmp.eq.s32.totalorder %s18, 0
      %p117 = por %p115, %p116
      %p118 = scmp.le.s32.totalorder 1, %s12
      %p119 = scmp.lt.s32.totalorder %s12, 3
      %p120 = pnand %p118, %p119
      %p121 = pneg %p120
      // Predicated region
      $region9: #{residual_forward.1} parent=5 // pred_check
        _
      $region10: #{residual_forward.1} parent=5 // pred_check_branch
        %123 = sbr.rel (%p120) target = $region12
      $region11: #{residual_forward.1} parent=5 // pred_region
        %s124 = ssub.s32 %s12, 1
        // Predicated region
        $region13: #{residual_forward.1} parent=11 // pred_check
          %p125 = pneg %p33
        $region14: #{residual_forward.1} parent=11 // pred_check_branch
          %127 = sbr.rel (%p125) target = $region16
        $region15: #{residual_forward.1} parent=11 // pred_region
          _
        $region16: #{residual_forward.1} parent=11 // pred_fallthru
          _
        // Predicated region
        $region17: #{residual_forward.1} parent=11 // pred_check
          %p128 = pneg %p84
        $region18: #{residual_forward.1} parent=11 // pred_check_branch
          %130 = sbr.rel (%p128) target = $region20
        $region19: #{residual_forward.1} parent=11 // pred_region
          _
        $region20: #{residual_forward.1} parent=11 // pred_fallthru
          _
      $region12: #{residual_forward.1} parent=5 // pred_fallthru
        _
      %p131 = scmp.lt.s32.totalorder %s12, 2
      // Predicated region
      $region21: #{residual_forward.1} parent=5 // pred_check
        %p132 = pneg %p131
      $region22: #{residual_forward.1} parent=5 // pred_check_branch
        %134 = sbr.rel (%p132) target = $region24
      $region23: #{residual_forward.1} parent=5 // pred_region
        // Predicated region
        $region25: #{residual_forward.1} parent=23 // pred_check
          %p135 = pneg %p57
        $region26: #{residual_forward.1} parent=23 // pred_check_branch
          %137 = sbr.rel (%p135) target = $region28
        $region27: #{residual_forward.1} parent=23 // pred_region
          %s138 = sand.u32 %s47, 1
          %s139 = scalar_lea.sflag [#allocation3], %s138
          %s140 = sand.u32 %s47, 1
          %s141 = smul.addr %s140, 64
          %s142 = scalar_lea.vmem [#allocation2], %s141
          %p143 = scmp.lt.s32.totalorder %s12, 0
          %s144 = scalar_select %p143, %s12, 0
          %s146 = ssub.s32 1024, 1024
          %147 = vsyncadd %s139, %s146
          %s148 = smul.addr %s144, 64
          %s149 = scalar_lea.hbm %s1, %s148
          %s150 = sshll.u32 %s142, 4
          %s151 = int_to_ptr.vmem [resolvable:$true] %s150
          %156 = dma.hbm_to_vmem [thread:$0]  %s149, 1024, %s151, %s139, 64, 64, 4
        $region28: #{residual_forward.1} parent=23 // pred_fallthru
          _
      $region24: #{residual_forward.1} parent=5 // pred_fallthru
        _
      %p157 = scmp.le.s32.totalorder 1, %s12
      %p158 = scmp.lt.s32.totalorder %s12, 3
      %p159 = pnand %p157, %p158
      %p160 = pneg %p159
      // Predicated region
      $region29: #{residual_forward.1} parent=5 // pred_check
        _
      $region30: #{residual_forward.1} parent=5 // pred_check_branch
        %162 = sbr.rel (%p159) target = $region32
      $region31: #{residual_forward.1} parent=5 // pred_region
        %s163 = ssub.s32 %s12, 1
        %s164 = sand.u32 %s50, 1
        %s165 = scalar_lea.sflag [#allocation3], %s164
        %s166 = sand.u32 %s50, 1
        %s167 = smul.addr %s166, 64
        %s168 = scalar_lea.vmem [#allocation2], %s167
        // Predicated region
        $region33: #{residual_forward.1} parent=31 // pred_check
          %p169 = pneg %p63
        $region34: #{residual_forward.1} parent=31 // pred_check_branch
          %171 = sbr.rel (%p169) target = $region36
        $region35: #{residual_forward.1} parent=31 // pred_region
          %172 = dma.done %s165, 1024
        $region36: #{residual_forward.1} parent=31 // pred_fallthru
          _
        %p173 = pneg %p33
        %p174 = pneg %p30
        %s175 = sand.u32 %s50, 1
        %s176 = scalar_lea.sflag [#allocation3], %s175
        %s177 = sand.u32 %s50, 1
        %s178 = smul.addr %s177, 64
        %s179 = scalar_lea.vmem [#allocation2], %s178
        %p180 = pneg %p63
        %p181 = pneg %p60
        %p182 = pneg %p84
        %p183 = pneg %p81
        %p184 = pneg %p110
        %p185 = pneg %p107
        %p186 = scmp.lt.s32.totalorder %s17, 1
        %s187 = scalar_select %p186, %s17, 1
        %s188 = smul.addr %s187, 8
        %s189 = scalar_lea.vmem %s3, %s188
        %p190 = scmp.lt.s32.totalorder %s17, 0
        %s191 = scalar_select %p190, %s17, 0
        %p192 = scmp.lt.s32.totalorder %s17, 1
        %s193 = scalar_select %p192, %s17, 1
        %s194 = smul.addr %s193, 8
        %s195 = scalar_lea.vmem %s3, %s194
        %p197 = scmp.lt.s32.totalorder %s17, 1
        // Predicated region
        $region37: #{residual_forward.1} parent=31 // pred_check
          %p198 = pneg %p197
        $region38: #{residual_forward.1} parent=31 // pred_check_branch
          %200 = sbr.rel (%p198) target = $region40
        $region39: #{residual_forward.1} parent=31 // pred_region
          %v201 = vld [vmem:[%s0] sm:$0xff]
          %v202 = vpack.c.bf16 %v201, %v201
          %v203 = vld [vmem:[%s168] sm:$0xf]
          %v204 = vld [vmem:[%s168 + $0x4] sm:$0xf]
          %v205 = vld [vmem:[%s168 + $0x8] sm:$0xf]
          %v206 = vld [vmem:[%s168 + $0xc] sm:$0xf]
          %v207 = vld [vmem:[%s168 + $0x10] sm:$0xf]
          %v208 = vld [vmem:[%s168 + $0x14] sm:$0xf]
          %v209 = vld [vmem:[%s168 + $0x18] sm:$0xf]
          %v210 = vld [vmem:[%s168 + $0x1c] sm:$0xf]
          %v211 = vld [vmem:[%s168 + $0x20] sm:$0xf]
          %v212 = vld [vmem:[%s168 + $0x24] sm:$0xf]
          %v213 = vld [vmem:[%s168 + $0x28] sm:$0xf]
          %v214 = vld [vmem:[%s168 + $0x2c] sm:$0xf]
          %v215 = vld [vmem:[%s168 + $0x30] sm:$0xf]
          %v216 = vld [vmem:[%s168 + $0x34] sm:$0xf]
          %v217 = vld [vmem:[%s168 + $0x38] sm:$0xf]
          %v218 = vld [vmem:[%s168 + $0x3c] sm:$0xf]
          %v235 = vunpack.c.l.b16 %v203
          %v236 = vunpack.c.l.b16 %v204
          %v237 = vunpack.c.l.b16 %v205
          %v238 = vunpack.c.l.b16 %v206
          %v239 = vunpack.c.l.b16 %v207
          %v240 = vunpack.c.l.b16 %v208
          %v241 = vunpack.c.l.b16 %v209
          %v242 = vunpack.c.l.b16 %v210
          %v243 = vunpack.c.l.b16 %v211
          %v244 = vunpack.c.l.b16 %v212
          %v245 = vunpack.c.l.b16 %v213
          %v246 = vunpack.c.l.b16 %v214
          %v247 = vunpack.c.l.b16 %v215
          %v248 = vunpack.c.l.b16 %v216
          %v249 = vunpack.c.l.b16 %v217
          %v250 = vunpack.c.l.b16 %v218
          %v251 = vpack.c.b16 %v236, %v235
          %v252 = vpack.c.b16 %v238, %v237
          %v253 = vpack.c.b16 %v240, %v239
          %v254 = vpack.c.b16 %v242, %v241
          %v255 = vpack.c.b16 %v244, %v243
          %v256 = vpack.c.b16 %v246, %v245
          %v257 = vpack.c.b16 %v248, %v247
          %v258 = vpack.c.b16 %v250, %v249
          %267 = vmatprep.subr.bf16.mxu0 0
          %268 = vmatpush1.bf16.msra.mxu0 %v258
          %269 = vmatprep.subr.bf16.mxu0 0
          %270 = vmatpush1.bf16.msra.mxu0 %v257
          %271 = vmatprep.subr.bf16.mxu0 0
          %272 = vmatpush1.bf16.msra.mxu0 %v256
          %273 = vmatprep.subr.bf16.mxu0 0
          %274 = vmatpush1.bf16.msra.mxu0 %v255
          %275 = vmatprep.subr.bf16.mxu0 0
          %276 = vmatpush1.bf16.msra.mxu0 %v254
          %277 = vmatprep.subr.bf16.mxu0 0
          %278 = vmatpush1.bf16.msra.mxu0 %v253
          %279 = vmatprep.subr.bf16.mxu0 0
          %280 = vmatpush1.bf16.msra.mxu0 %v252
          %281 = vmatprep.subr.bf16.mxu0 0
          %282 = vmatpush1.bf16.msra.mxu0 %v251
          %283 = vmatprep.subr.bf16.mxu0 0
          %284 = vmatpush2.bf16.msra.mxu0 0
          %285 = vmatprep.subr.bf16.mxu0 0
          %286 = vmatpush2.bf16.msra.mxu0 0
          %287 = vmatprep.subr.bf16.mxu0 0
          %288 = vmatpush2.bf16.msra.mxu0 0
          %289 = vmatprep.subr.bf16.mxu0 0
          %290 = vmatpush2.bf16.msra.mxu0 0
          %291 = vmatprep.subr.bf16.mxu0 0
          %292 = vmatpush2.bf16.msra.mxu0 0
          %293 = vmatprep.subr.bf16.mxu0 0
          %294 = vmatpush2.bf16.msra.mxu0 0
          %295 = vmatprep.subr.bf16.mxu0 0
          %296 = vmatpush2.bf16.msra.mxu0 0
          %297 = vmatprep.subr.bf16.mxu0 0
          %298 = vmatpush2.bf16.msra.mxu0 0
          %299 = vmatprep.mubr.bf16.mxu0 0
          %300 = vmatmul.mubr.bf16.gmra.mxu0 %v202
          %v301 = vpop.f32.mrf.mxu0
          %v302 = vadd.f32 0.0, %v301
          %v303 = vpop.f32.mrf.mxu0
          %v304 = vpop.f32.mrf.mxu0
          %v305 = vpop.f32.mrf.mxu0
          %306 = vdwg.mxu0
          %v307 = vrot.slane %v302, 4
          %v308 = vadd.f32 %v302, %v307
          %v309 = vrot.slane %v308, 2
          %v310 = vadd.f32 %v308, %v309
          %v311 = vrot.slane %v310, 1
          %v312 = vadd.f32 %v310, %v311
          %v313 = vrcp.pop 8.0
          %v314 = vmul.f32 %v312, %v313
          %v315 = vsub.f32 %v302, %v314
          %v316 = vmul.f32 %v315, %v315
          %v317 = vrot.slane %v316, 4
          %v318 = vadd.f32 %v316, %v317
          %v319 = vrot.slane %v318, 2
          %v320 = vadd.f32 %v318, %v319
          %v321 = vrot.slane %v320, 1
          %v322 = vadd.f32 %v320, %v321
          %v323 = vmul.f32 %v322, %v313
          %s324 = smul.u32 %s17, 128
          %s325 = sshra.s32 %s324, 7
          %s326 = sand.u32 %s324, 127
          %s327 = scalar_lea.vmem %s2, %s325
          %v328 = vld [vmem:[%s327] sm:$0x3]
          %v329 = vadd.f32 %v323, 1e-05
          %v330 = vrsqrt.pop %v329
          %v331 = vmul.f32 %v330, %v328
          %v332 = vlaneseq
          %v333 = vshrl.u32 %v332, 7
          %v334 = vsub.s32 0, %v333
          %v335 = vrot.slane %v331, %v334
          %v336 = vmul.f32 %v315, %v335
          %v337 = vlaneseq
          %v338 = vshrl.u32 %v337, 7
          %v339 = vsub.s32 1, %v338
          %v340 = vrot.slane %v328, %v339
          %v341 = vadd.f32 %v336, %v340
          %v342 = vmax.f32 %v341, 0.0
          %343 = vst [vmem:[%s195] sm:$0xff] %v342
        $region40: #{residual_forward.1} parent=31 // pred_fallthru
          _
        %p344 = scmp.ge.s32.totalorder %s17, 1
        // Predicated region
        $region41: #{residual_forward.1} parent=31 // pred_check
          %p345 = pneg %p344
        $region42: #{residual_forward.1} parent=31 // pred_check_branch
          %347 = sbr.rel (%p345) target = $region44
        $region43: #{residual_forward.1} parent=31 // pred_region
          %s348 = ssub.s32 %s17, 1
          %s349 = smul.u32 %s348, 128
          %s350 = sshra.s32 %s349, 7
          %s351 = sand.u32 %s349, 127
          %s352 = scalar_lea.vmem %s0, %s350
          %v353 = vld [vmem:[%s352] sm:$0xff]
          %354 = vst [vmem:[%s195] sm:$0xff] %v353
        $region44: #{residual_forward.1} parent=31 // pred_fallthru
          _
        %p355 = scmp.lt.s32.totalorder %s17, 1
        %s356 = scalar_select %p355, %s17, 1
        %s357 = smul.addr %s356, 8
        %s358 = scalar_lea.vmem %s3, %s357
        // Predicated region
        $region45: #{residual_forward.1} parent=31 // pred_check
          %p359 = pneg %p107
        $region46: #{residual_forward.1} parent=31 // pred_check_branch
          %361 = sbr.rel (%p359) target = $region48
        $region47: #{residual_forward.1} parent=31 // pred_region
          _
        $region48: #{residual_forward.1} parent=31 // pred_fallthru
          _
      $region32: #{residual_forward.1} parent=5 // pred_fallthru
        _
      %p362 = scmp.le.s32.totalorder 2, %s12
      // Predicated region
      $region49: #{residual_forward.1} parent=5 // pred_check
        %p363 = pneg %p362
      $region50: #{residual_forward.1} parent=5 // pred_check_branch
        %365 = sbr.rel (%p363) target = $region52
      $region51: #{residual_forward.1} parent=5 // pred_region
        %s366 = ssub.s32 %s12, 2
        // Predicated region
        $region53: #{residual_forward.1} parent=51 // pred_check
          %p367 = pneg %p113
        $region54: #{residual_forward.1} parent=51 // pred_check_branch
          %369 = sbr.rel (%p367) target = $region56
        $region55: #{residual_forward.1} parent=51 // pred_region
          %p370 = scmp.lt.s32.totalorder %s18, 1
          %s371 = scalar_select %p370, %s18, 1
          %s372 = smul.addr %s371, 8
          %s373 = scalar_lea.vmem %s3, %s372
        $region56: #{residual_forward.1} parent=51 // pred_fallthru
          _
      $region52: #{residual_forward.1} parent=5 // pred_fallthru
        _
    $region6: #{residual_forward.1} parent=1 // loop_footer
      %s16 = sadd.s32 1, %s12
    $region7: #{residual_forward.1} parent=1 // loop_footer_branch
      %11 = sbr.rel target = $region3
    $region8: #{residual_forward.1} parent=1 // loop_exit
      _
    %374 = vsyncpa [#allocation3], 1
    %s375 = scalar_lea.sflag [#allocation3], 1
    %376 = vsyncpa %s375, 1

</llo_original>
